<compile_context>
chip_gen: v7x
topology: tpu7x:2x2x1
jax: 0.10.0
libtpu: 0.0.40
codegen_flags: <defaults>
</compile_context>

<pallas_src>
import math

import jax
import jax.numpy as jnp
from jax.experimental import pallas as pl
from jax.experimental.pallas import tpu as pltpu


# ---------------------------------------------------------------------------
# Kernel: 3 x (matmul + bias + ReLU)  +  final multiply-reduce output layer.
# Per grid step it sees one (tile_b, input_size) slab of x (f32, cast in-kernel);
# all weights are full-extent blocks that stay resident across the batch grid.
# ---------------------------------------------------------------------------
def mlp_kernel(x_ref, w1_ref, w2_ref, w3_ref, w4r_ref, b_ref, o_ref):
    hid = w1_ref.shape[1]       # hidden
    hid2 = w2_ref.shape[1]      # 2 * hidden
    cdt = w1_ref.dtype          # MXU operand dtype (bf16 or f32)

    b = b_ref[...]              # (4, 2*hidden) f32: rows = b1, b2', b3', b4'

    # fc1 + ReLU        (BN1 was folded into fc2's weight/bias).  Cast x on the
    # VPU here instead of in the wrapper (saves a full HBM pass over x).
    z = jnp.dot(x_ref[...].astype(cdt), w1_ref[...],
                preferred_element_type=jnp.float32)
    z = jnp.maximum(z + b[0:1, :hid], 0.0)

    # fc2' + ReLU       (BN2 folded into fc3)
    z = jnp.dot(z.astype(cdt), w2_ref[...], preferred_element_type=jnp.float32)
    z = jnp.maximum(z + b[1:2, :hid2], 0.0)

    # fc3' + ReLU       (BN3 folded into fc4)
    z = jnp.dot(z.astype(cdt), w3_ref[...], preferred_element_type=jnp.float32)
    z = jnp.maximum(z + b[2:3, :hid], 0.0)

    # fc4': N=1 output -> VPU multiply + lane reduction (no MXU pass needed).
    # NOTE: output block is (tile_b, 1); a lane-dense (1, tile_b) layout would
    # avoid masked vst's but the writeback is tiny here, so keep the simple form.
    out = jnp.sum(z * w4r_ref[...], axis=-1, keepdims=True) + b[3:4, 0:1]
    o_ref[...] = out.astype(o_ref.dtype)


# ---------------------------------------------------------------------------
# Parameter prep: fold eval-mode BN (+ its shift) into the next linear layer.
#   bn(z) = z*s + t,  s = gamma*rsqrt(var+eps),  t = beta - mean*s
#   fc_next(bn(z)) = z @ (diag(s) @ W) + (t @ W + b)
# ---------------------------------------------------------------------------
def fold_params(raw_params, compute_dtype=jnp.bfloat16):
    (w1, b1, g1, be1, m1, v1,
     w2, b2, g2, be2, m2, v2,
     w3, b3, g3, be3, m3, v3,
     w4, b4) = raw_params
    eps = jnp.float32(1e-5)

    def scale_shift(g, be, m, v):
        s = g * jax.lax.rsqrt(v + eps)
        return s, be - m * s

    s1, t1 = scale_shift(g1, be1, m1, v1)
    s2, t2 = scale_shift(g2, be2, m2, v2)
    s3, t3 = scale_shift(g3, be3, m3, v3)

    w2f = w2 * s1.reshape(-1, 1)
    b2f = b2 + t1 @ w2
    w3f = w3 * s2.reshape(-1, 1)
    b3f = b3 + t2 @ w3
    w4f = w4 * s3.reshape(-1, 1)          # (hidden, 1)
    b4f = b4 + t3 @ w4                    # (1, 1)

    hid2 = w2f.shape[1]

    def pad_to(v, n):
        return jnp.pad(v, ((0, 0), (0, n - v.shape[1])))

    # One consolidated bias operand: rows are [b1, b2', b3', b4' (col 0)].
    bstack = jnp.concatenate(
        [pad_to(b1, hid2), pad_to(b2f, hid2), pad_to(b3f, hid2), pad_to(b4f, hid2)],
        axis=0).astype(jnp.float32)

    w4row = w4f.reshape(1, -1).astype(jnp.float32)   # (1, hidden) for VPU reduce

    return (w1.astype(compute_dtype),
            w2f.astype(compute_dtype),
            w3f.astype(compute_dtype),
            w4row, bstack)


def _round_up(n, m):
    return (n + m - 1) // m * m


def neural_network_forward(x, raw_params, *, compute_dtype=jnp.bfloat16,
                           target_tile=2048):
    """Full MLP forward in one pallas_call, tiled over the batch dimension."""
    w1, w2, w3, w4row, bstack = fold_params(raw_params, compute_dtype)

    batch, in_size = x.shape
    hidden = w1.shape[1]
    hidden2 = w2.shape[1]

    # Row alignment: 16 for bf16 intermediates (packed sublanes), else 8.
    row_align = 8 if jnp.dtype(compute_dtype).itemsize == 4 else 16

    # Batch tile: as large as possible (overhead-bound kernel) but capped so the
    # grid has >= 2 steps whenever the batch allows it (v7x has 2 TensorCores and
    # the "parallel" axis is what shards the grid across them).
    tile_b = max(row_align,
                 min(target_tile, _round_up(pl.cdiv(batch, 2), row_align)))

    # No wrapper-side HBM pass over x for real batches: keep x f32 (cast happens
    # in-kernel) and let Pallas mask the ragged last block.  Only a batch smaller
    # than a single tile gets padded (negligible cost at that size).
    xp = x.astype(jnp.float32)
    padded_batch = batch
    if batch < tile_b:
        padded_batch = tile_b
        xp = jnp.pad(xp, ((0, tile_b - batch), (0, 0)))
    grid = pl.cdiv(padded_batch, tile_b)

    # Right-sized VMEM budget (v7x physical VMEM is only 64 MiB): double-buffered
    # x tiles dominate; weights/activations are well under 2 MiB at these sizes.
    vmem_limit = min(56 * 1024 * 1024,
                     max(16 * 1024 * 1024, 4 * tile_b * in_size * 4))

    out = pl.pallas_call(
        mlp_kernel,
        out_shape=jax.ShapeDtypeStruct((padded_batch, 1), jnp.float32),
        grid_spec=pltpu.PrefetchScalarGridSpec(
            num_scalar_prefetch=0,
            grid=(grid,),
            in_specs=[
                pl.BlockSpec((tile_b, in_size), lambda i: (i, 0)),   # x tile (f32)
                pl.BlockSpec((in_size, hidden), lambda i: (0, 0)),   # w1 (resident)
                pl.BlockSpec((hidden, hidden2), lambda i: (0, 0)),   # w2' (resident)
                pl.BlockSpec((hidden2, hidden), lambda i: (0, 0)),   # w3' (resident)
                pl.BlockSpec((1, hidden), lambda i: (0, 0)),         # w4' row
                pl.BlockSpec((4, hidden2), lambda i: (0, 0)),        # stacked biases
            ],
            out_specs=pl.BlockSpec((tile_b, 1), lambda i: (i, 0)),
        ),
        compiler_params=pltpu.CompilerParams(
            dimension_semantics=("parallel",),
            vmem_limit_bytes=vmem_limit,
        ),
    )(xp, w1, w2, w3, w4row, bstack)

    return out[:batch] if padded_batch != batch else out


# ---------------------------------------------------------------------------
# Parameter construction (matches the PyTorch init) and pure-JAX reference.
# ---------------------------------------------------------------------------
def _kaiming_uniform(key, fan_in, shape):
    bound = math.sqrt(2.0) * math.sqrt(3.0 / fan_in)
    return jax.random.uniform(key, shape, jnp.float32, minval=-bound, maxval=bound)


def _xavier_uniform(key, fan_in, fan_out, shape):
    bound = math.sqrt(6.0 / (fan_in + fan_out))
    return jax.random.uniform(key, shape, jnp.float32, minval=-bound, maxval=bound)


def make_params(key, input_size, hidden_size):
    h, h2 = hidden_size, 2 * hidden_size
    k1, k2, k3, k4 = jax.random.split(key, 4)

    # Linear weights pre-transposed to [in, out].
    w1 = _kaiming_uniform(k1, input_size, (input_size, h))
    w2 = _kaiming_uniform(k2, h, (h, h2))
    w3 = _kaiming_uniform(k3, h2, (h2, h))
    w4 = _xavier_uniform(k4, h, 1, (h, 1))

    def zeros(n):
        return jnp.zeros((1, n), jnp.float32)

    def ones(n):
        return jnp.ones((1, n), jnp.float32)

    # BatchNorm1d defaults: gamma=1, beta=0, running_mean=0, running_var=1.
    return (
        w1, zeros(h),  ones(h),  zeros(h),  zeros(h),  ones(h),    # fc1 + bn1
        w2, zeros(h2), ones(h2), zeros(h2), zeros(h2), ones(h2),   # fc2 + bn2
        w3, zeros(h),  ones(h),  zeros(h),  zeros(h),  ones(h),    # fc3 + bn3
        w4, jnp.zeros((1, 1), jnp.float32),                        # fc4
    )


def reference_forward(x, params):
    (w1, b1, g1, be1, m1, v1,
     w2, b2, g2, be2, m2, v2,
     w3, b3, g3, be3, m3, v3,
     w4, b4) = params
    eps = 1e-5

    def block(h, w, b, g, be, m, v):
        z = jnp.maximum(h @ w + b, 0.0)
        return (z - m) / jnp.sqrt(v + eps) * g + be

    h = block(x, w1, b1, g1, be1, m1, v1)
    h = block(h, w2, b2, g2, be2, m2, v2)
    h = block(h, w3, b3, g3, be3, m3, v3)
    return h @ w4 + b4


if __name__ == "__main__":
    input_size = 32
    hidden_size = 32

    key = jax.random.PRNGKey(0)
    kx, kx2, kp = jax.random.split(key, 3)
    params = make_params(kp, input_size, hidden_size)

    # --- Small batch (single grid step), default bf16 MXU operands. ---------
    batch = 8
    x = jax.random.normal(kx, (batch, input_size), jnp.float32)
    ref = reference_forward(x, params)

    out_bf16 = jax.block_until_ready(neural_network_forward(x, params))
    assert out_bf16.shape == (batch, 1), out_bf16.shape
    # Inputs/weights are rounded to bf16 for the MXU, so only ~1% agreement expected.
    assert jnp.allclose(out_bf16, ref, atol=2.5e-1, rtol=5e-2), (out_bf16, ref)

    # --- f32-operand path (tight tolerance). --------------------------------
    out_f32 = jax.block_until_ready(
        neural_network_forward(x, params, compute_dtype=jnp.float32))
    assert out_f32.shape == (batch, 1), out_f32.shape
    assert jnp.allclose(out_f32, ref, atol=1e-4, rtol=1e-4), (out_f32, ref)

    # --- Larger batch: multi-step grid (both v7x cores) with a ragged last
    #     block handled by Pallas masking (no wrapper-side pad or cast). -----
    batch2 = 300
    x2 = jax.random.normal(kx2, (batch2, input_size), jnp.float32)
    ref2 = reference_forward(x2, params)
    out2 = jax.block_until_ready(neural_network_forward(x2, params))
    assert out2.shape == (batch2, 1), out2.shape
    assert jnp.allclose(out2, ref2, atol=2.5e-1, rtol=5e-2), (out2, ref2)

    # TODO(synk): Dropout is eval-mode identity and BatchNorm1d uses running
    # statistics (inference semantics); training-mode batch stats / stochastic
    # dropout are not implemented.
    print("KERNEL_OK")
</pallas_src>

<mosaic_0001>
module attributes {stable_mosaic.version = 11 : i64} {
  func.func @mlp_kernel(%arg0: i32, %arg1: memref<16x32xf32, #tpu.memory_space<vmem>>, %arg2: memref<32x32xbf16, #tpu.memory_space<vmem>>, %arg3: memref<32x64xbf16, #tpu.memory_space<vmem>>, %arg4: memref<64x32xbf16, #tpu.memory_space<vmem>>, %arg5: memref<1x32xf32, #tpu.memory_space<vmem>>, %arg6: memref<4x64xf32, #tpu.memory_space<vmem>>, %arg7: memref<16x1xf32, #tpu.memory_space<vmem>>) attributes {dimension_semantics = [#tpu.dimension_semantics<parallel>], iteration_bounds = array<i64: 1>, scalar_prefetch = 0 : i64, scratch_operands = 0 : i64, tpu.core_type = #tpu.core_type<tc>, window_params = [{transform_indices = @transform_0, window_bounds = array<i64: 16, 32>}, {pipeline_mode = #tpu.pipeline_mode<synchronous>, transform_indices = @transform_1, window_bounds = array<i64: 32, 32>}, {pipeline_mode = #tpu.pipeline_mode<synchronous>, transform_indices = @transform_2, window_bounds = array<i64: 32, 64>}, {pipeline_mode = #tpu.pipeline_mode<synchronous>, transform_indices = @transform_3, window_bounds = array<i64: 64, 32>}, {pipeline_mode = #tpu.pipeline_mode<synchronous>, transform_indices = @transform_4, window_bounds = array<i64: 1, 32>}, {pipeline_mode = #tpu.pipeline_mode<synchronous>, transform_indices = @transform_5, window_bounds = array<i64: 4, 64>}, {transform_indices = @transform_6, window_bounds = array<i64: 16, 1>}]} {
    %c0 = arith.constant 0 : index
    %c0_0 = arith.constant 0 : index
    %0 = vector.load %arg6[%c0, %c0_0] : memref<4x64xf32, #tpu.memory_space<vmem>>, vector<4x64xf32>
    %c0_1 = arith.constant 0 : index
    %c0_2 = arith.constant 0 : index
    %1 = vector.load %arg1[%c0_1, %c0_2] : memref<16x32xf32, #tpu.memory_space<vmem>>, vector<16x32xf32>
    %2 = arith.truncf %1 : vector<16x32xf32> to vector<16x32xbf16>
    %c0_3 = arith.constant 0 : index
    %c0_4 = arith.constant 0 : index
    %3 = vector.load %arg2[%c0_3, %c0_4] : memref<32x32xbf16, #tpu.memory_space<vmem>>, vector<32x32xbf16>
    %cst = arith.constant dense<0.000000e+00> : vector<16x32xf32>
    %4 = tpu.matmul %2, %3, %cst {dimension_numbers = #tpu.dot_dimension_numbers<[1], [0], [0], [1], [0, 0, 1, 1], [], []>} : vector<16x32xbf16>, vector<32x32xbf16>, vector<16x32xf32> -> vector<16x32xf32>
    %5 = vector.extract_strided_slice %0 {offsets = [0, 0], sizes = [1, 32], strides = [1, 1]} : vector<4x64xf32> to vector<1x32xf32>
    %6 = vector.broadcast %5 : vector<1x32xf32> to vector<16x32xf32>
    %7 = arith.addf %4, %6 : vector<16x32xf32>
    %cst_5 = arith.constant 0.000000e+00 : f32
    %8 = vector.broadcast %cst_5 : f32 to vector<16x32xf32>
    %9 = arith.maximumf %7, %8 : vector<16x32xf32>
    %10 = arith.truncf %9 : vector<16x32xf32> to vector<16x32xbf16>
    %c0_6 = arith.constant 0 : index
    %c0_7 = arith.constant 0 : index
    %11 = vector.load %arg3[%c0_6, %c0_7] : memref<32x64xbf16, #tpu.memory_space<vmem>>, vector<32x64xbf16>
    %cst_8 = arith.constant dense<0.000000e+00> : vector<16x64xf32>
    %12 = tpu.matmul %10, %11, %cst_8 {dimension_numbers = #tpu.dot_dimension_numbers<[1], [0], [0], [1], [0, 0, 1, 1], [], []>} : vector<16x32xbf16>, vector<32x64xbf16>, vector<16x64xf32> -> vector<16x64xf32>
    %13 = vector.extract_strided_slice %0 {offsets = [1, 0], sizes = [1, 64], strides = [1, 1]} : vector<4x64xf32> to vector<1x64xf32>
    %14 = vector.broadcast %13 : vector<1x64xf32> to vector<16x64xf32>
    %15 = arith.addf %12, %14 : vector<16x64xf32>
    %cst_9 = arith.constant 0.000000e+00 : f32
    %16 = vector.broadcast %cst_9 : f32 to vector<16x64xf32>
    %17 = arith.maximumf %15, %16 : vector<16x64xf32>
    %18 = arith.truncf %17 : vector<16x64xf32> to vector<16x64xbf16>
    %c0_10 = arith.constant 0 : index
    %c0_11 = arith.constant 0 : index
    %19 = vector.load %arg4[%c0_10, %c0_11] : memref<64x32xbf16, #tpu.memory_space<vmem>>, vector<64x32xbf16>
    %cst_12 = arith.constant dense<0.000000e+00> : vector<16x32xf32>
    %20 = tpu.matmul %18, %19, %cst_12 {dimension_numbers = #tpu.dot_dimension_numbers<[1], [0], [0], [1], [0, 0, 1, 1], [], []>} : vector<16x64xbf16>, vector<64x32xbf16>, vector<16x32xf32> -> vector<16x32xf32>
    %21 = vector.extract_strided_slice %0 {offsets = [2, 0], sizes = [1, 32], strides = [1, 1]} : vector<4x64xf32> to vector<1x32xf32>
    %22 = vector.broadcast %21 : vector<1x32xf32> to vector<16x32xf32>
    %23 = arith.addf %20, %22 : vector<16x32xf32>
    %cst_13 = arith.constant 0.000000e+00 : f32
    %24 = vector.broadcast %cst_13 : f32 to vector<16x32xf32>
    %25 = arith.maximumf %23, %24 : vector<16x32xf32>
    %c0_14 = arith.constant 0 : index
    %c0_15 = arith.constant 0 : index
    %26 = vector.load %arg5[%c0_14, %c0_15] : memref<1x32xf32, #tpu.memory_space<vmem>>, vector<1x32xf32>
    %27 = vector.broadcast %26 : vector<1x32xf32> to vector<16x32xf32>
    %28 = arith.mulf %25, %27 : vector<16x32xf32>
    %cst_16 = arith.constant dense<0.000000e+00> : vector<16xf32>
    %29 = vector.multi_reduction <add>, %28, %cst_16 [1] : vector<16x32xf32> to vector<16xf32>
    %30 = vector.shape_cast %29 : vector<16xf32> to vector<16x1xf32>
    %31 = vector.extract_strided_slice %0 {offsets = [3, 0], sizes = [1, 1], strides = [1, 1]} : vector<4x64xf32> to vector<1x1xf32>
    %32 = vector.broadcast %31 : vector<1x1xf32> to vector<16x1xf32>
    %33 = arith.addf %30, %32 : vector<16x1xf32>
    %c0_17 = arith.constant 0 : index
    %c0_18 = arith.constant 0 : index
    %34 = vector.load %arg7[%c0_17, %c0_18] : memref<16x1xf32, #tpu.memory_space<vmem>>, vector<16x1xf32>
    tpu.vector_store %arg7[%c0_17, %c0_18], %33 {strides = array<i32>} : memref<16x1xf32, #tpu.memory_space<vmem>>, vector<16x1xf32>,
    return
  }
  func.func @transform_0(%arg0: i32) -> (i32, i32) {
    %c0_i32 = arith.constant 0 : i32
    %c0_i32_0 = arith.constant 0 : i32
    return %arg0, %c0_i32 : i32, i32
  }
  func.func @transform_1(%arg0: i32) -> (i32, i32) {
    %c0_i32 = arith.constant 0 : i32
    %c0_i32_0 = arith.constant 0 : i32
    %c0_i32_1 = arith.constant 0 : i32
    return %c0_i32, %c0_i32_0 : i32, i32
  }
  func.func @transform_2(%arg0: i32) -> (i32, i32) {
    %c0_i32 = arith.constant 0 : i32
    %c0_i32_0 = arith.constant 0 : i32
    %c0_i32_1 = arith.constant 0 : i32
    return %c0_i32, %c0_i32_0 : i32, i32
  }
  func.func @transform_3(%arg0: i32) -> (i32, i32) {
    %c0_i32 = arith.constant 0 : i32
    %c0_i32_0 = arith.constant 0 : i32
    %c0_i32_1 = arith.constant 0 : i32
    return %c0_i32, %c0_i32_0 : i32, i32
  }
  func.func @transform_4(%arg0: i32) -> (i32, i32) {
    %c0_i32 = arith.constant 0 : i32
    %c0_i32_0 = arith.constant 0 : i32
    %c0_i32_1 = arith.constant 0 : i32
    return %c0_i32, %c0_i32_0 : i32, i32
  }
  func.func @transform_5(%arg0: i32) -> (i32, i32) {
    %c0_i32 = arith.constant 0 : i32
    %c0_i32_0 = arith.constant 0 : i32
    %c0_i32_1 = arith.constant 0 : i32
    return %c0_i32, %c0_i32_0 : i32, i32
  }
  func.func @transform_6(%arg0: i32) -> (i32, i32) {
    %c0_i32 = arith.constant 0 : i32
    %c0_i32_0 = arith.constant 0 : i32
    return %arg0, %c0_i32 : i32, i32
  }
}

</mosaic_0001>

<llo_original>
// kernel: tpu_custom_call.1
$region0: #{tpu_custom_call.1}
  #allocation0 [shape = 'u32[]', space=smem, size = 0x4, offset = 0x4, fixed_abs, tag = 'smem constant byte address 0x4 - core index']
  #allocation1 [shape = 'u32[144,128]{1,0:T(1,128)}', space=vmem, size = 0x12000, scoped, tag = 'internal scratch']
  %s0 = inlined_call_operand.vmem [shape: f32[16,32], index: 0, kind: input, shape index: {}]
  %s1 = inlined_call_operand.vmem [shape: bf16[32,32], index: 1, kind: input, shape index: {}]
  %s2 = inlined_call_operand.vmem [shape: bf16[32,64], index: 2, kind: input, shape index: {}]
  %s3 = inlined_call_operand.vmem [shape: bf16[64,32], index: 3, kind: input, shape index: {}]
  %s4 = inlined_call_operand.vmem [shape: f32[1,32], index: 4, kind: input, shape index: {}]
  %s5 = inlined_call_operand.vmem [shape: f32[4,64], index: 5, kind: input, shape index: {}]
  %s6 = inlined_call_operand.vmem [shape: f32[16,1], index: 6, kind: output, shape index: {}]
  %s7 = sld [smem:[#allocation0]]
  $region34: #{tpu_custom_call.1} parent=0
    _
  %s9 = ssub.s32 1, %s7
  %s10 = scalar_select 0, %s9, %s7
  // Predicated region
  $region2: #{tpu_custom_call.1} parent=0 // pred_check
    _
  $region3: #{tpu_custom_call.1} parent=0 // pred_check_branch
    %12 = sbr.rel (0) target = $region5
  $region4: #{tpu_custom_call.1} parent=0 // pred_region
    _
  $region5: #{tpu_custom_call.1} parent=0 // pred_fallthru
    _
  // Predicated region
  $region6: #{tpu_custom_call.1} parent=0 // pred_check
    _
  $region7: #{tpu_custom_call.1} parent=0 // pred_check_branch
    %14 = sbr.rel (0) target = $region9
  $region8: #{tpu_custom_call.1} parent=0 // pred_region
    _
  $region9: #{tpu_custom_call.1} parent=0 // pred_fallthru
    _
  // Predicated region
  $region10: #{tpu_custom_call.1} parent=0 // pred_check
    _
  $region11: #{tpu_custom_call.1} parent=0 // pred_check_branch
    %16 = sbr.rel (0) target = $region13
  $region12: #{tpu_custom_call.1} parent=0 // pred_region
    _
  $region13: #{tpu_custom_call.1} parent=0 // pred_fallthru
    _
  // Predicated region
  $region14: #{tpu_custom_call.1} parent=0 // pred_check
    _
  $region15: #{tpu_custom_call.1} parent=0 // pred_check_branch
    %18 = sbr.rel (0) target = $region17
  $region16: #{tpu_custom_call.1} parent=0 // pred_region
    _
  $region17: #{tpu_custom_call.1} parent=0 // pred_fallthru
    _
  // Predicated region
  $region18: #{tpu_custom_call.1} parent=0 // pred_check
    _
  $region19: #{tpu_custom_call.1} parent=0 // pred_check_branch
    %20 = sbr.rel (0) target = $region21
  $region20: #{tpu_custom_call.1} parent=0 // pred_region
    _
  $region21: #{tpu_custom_call.1} parent=0 // pred_fallthru
    _
  // Predicated region
  $region22: #{tpu_custom_call.1} parent=0 // pred_check
    _
  $region23: #{tpu_custom_call.1} parent=0 // pred_check_branch
    %22 = sbr.rel (0) target = $region25
  $region24: #{tpu_custom_call.1} parent=0 // pred_region
    _
  $region25: #{tpu_custom_call.1} parent=0 // pred_fallthru
    _
  %v24 = vld [vmem:[%s5] sm:$0xf]
  %v25 = vld [vmem:[%s0] sm:$0xff]
  %v26 = vld [vmem:[%s0 + $0x8] sm:$0xff]
  %v27 = vpack.c.bf16 %v26, %v25
  %v28 = vld [vmem:[%s1] sm:$0xf]
  %v29 = vld [vmem:[%s1 + $0x4] sm:$0xf]
  %v30 = vld [vmem:[%s1 + $0x8] sm:$0xf]
  %v31 = vld [vmem:[%s1 + $0xc] sm:$0xf]
  %v32 = vlaneseq
  %v33 = vshrl.u32 %v32, 7
  %v34 = vsub.s32 0, %v33
  %v35 = vrot.slane %v24, %v34
  %v40 = vunpack.c.l.b16 %v28
  %v41 = vunpack.c.l.b16 %v29
  %v42 = vunpack.c.l.b16 %v30
  %v43 = vunpack.c.l.b16 %v31
  %v44 = vpack.c.b16 %v41, %v40
  %v45 = vpack.c.b16 %v43, %v42
  %vm48 = vcmask 261120
  %v50 = vsel %vm48, %v27, 0
  %52 = vmatprep.subr.bf16.mxu0 0
  %53 = vmatpush1.bf16.msra.mxu0 %v44
  %54 = vmatprep.subr.bf16.mxu0 0
  %55 = vmatpush1.bf16.msra.mxu0 %v45
  %56 = vmatprep.subr.bf16.mxu0 0
  %57 = vmatpush1.bf16.msra.mxu0 0
  %58 = vmatprep.subr.bf16.mxu0 0
  %59 = vmatpush1.bf16.msra.mxu0 0
  %60 = vmatprep.subr.bf16.mxu0 0
  %61 = vmatpush1.bf16.msra.mxu0 0
  %62 = vmatprep.subr.bf16.mxu0 0
  %63 = vmatpush1.bf16.msra.mxu0 0
  %64 = vmatprep.subr.bf16.mxu0 0
  %65 = vmatpush1.bf16.msra.mxu0 0
  %66 = vmatprep.subr.bf16.mxu0 0
  %67 = vmatpush1.bf16.msra.mxu0 0
  %68 = vmatprep.subr.bf16.mxu0 0
  %69 = vmatpush1.bf16.msra.mxu0 0
  %70 = vmatprep.subr.bf16.mxu0 0
  %71 = vmatpush1.bf16.msra.mxu0 0
  %72 = vmatprep.subr.bf16.mxu0 0
  %73 = vmatpush1.bf16.msra.mxu0 0
  %74 = vmatprep.subr.bf16.mxu0 0
  %75 = vmatpush1.bf16.msra.mxu0 0
  %76 = vmatprep.subr.bf16.mxu0 0
  %77 = vmatpush1.bf16.msra.mxu0 0
  %78 = vmatprep.subr.bf16.mxu0 0
  %79 = vmatpush1.bf16.msra.mxu0 0
  %80 = vmatprep.subr.bf16.mxu0 0
  %81 = vmatpush1.bf16.msra.mxu0 0
  %82 = vmatprep.subr.bf16.mxu0 0
  %83 = vmatpush1.bf16.msra.mxu0 0
  %84 = vmatprep.mubr.bf16.mxu0 0
  %85 = vmatmul.mubr.bf16.gmra.mrb[0].mxu0 %v50
  %v86 = vpop.f32.mrb[0].mxu0
  %v87 = vadd.f32 %v35, %v86
  %v88 = vpop.f32.mrb[0].mxu0
  %v89 = vpop.f32.mrb[0].mxu0
  %v90 = vadd.f32 %v35, %v89
  %v91 = vpop.f32.mrb[0].mxu0
  %92 = vdwg.mxu0
  %v93 = vmax.f32 %v87, 0.0
  %v94 = vmax.f32 %v90, 0.0
  %v95 = vpack.c.bf16 %v94, %v93
  %v96 = vld [vmem:[%s2] sm:$0xf]
  %v97 = vld [vmem:[%s2 + $0x4] sm:$0xf]
  %v98 = vld [vmem:[%s2 + $0x8] sm:$0xf]
  %v99 = vld [vmem:[%s2 + $0xc] sm:$0xf]
  %v100 = vlaneseq
  %v101 = vshrl.u32 %v100, 7
  %v102 = vsub.s32 1, %v101
  %v103 = vrot.slane %v24, %v102
  %v108 = vunpack.c.l.b16 %v96
  %v109 = vunpack.c.l.b16 %v97
  %v110 = vunpack.c.l.b16 %v98
  %v111 = vunpack.c.l.b16 %v99
  %v112 = vpack.c.b16 %v109, %v108
  %v113 = vpack.c.b16 %v111, %v110
  %v117 = vsel %vm48, %v95, 0
  %119 = vmatprep.subr.bf16.mxu0 0
  %120 = vmatpush1.bf16.msra.mxu0 %v112
  %121 = vmatprep.subr.bf16.mxu0 0
  %122 = vmatpush1.bf16.msra.mxu0 %v113
  %123 = vmatprep.subr.bf16.mxu0 0
  %124 = vmatpush1.bf16.msra.mxu0 0
  %125 = vmatprep.subr.bf16.mxu0 0
  %126 = vmatpush1.bf16.msra.mxu0 0
  %127 = vmatprep.subr.bf16.mxu0 0
  %128 = vmatpush1.bf16.msra.mxu0 0
  %129 = vmatprep.subr.bf16.mxu0 0
  %130 = vmatpush1.bf16.msra.mxu0 0
  %131 = vmatprep.subr.bf16.mxu0 0
  %132 = vmatpush1.bf16.msra.mxu0 0
  %133 = vmatprep.subr.bf16.mxu0 0
  %134 = vmatpush1.bf16.msra.mxu0 0
  %135 = vmatprep.subr.bf16.mxu0 0
  %136 = vmatpush1.bf16.msra.mxu0 0
  %137 = vmatprep.subr.bf16.mxu0 0
  %138 = vmatpush1.bf16.msra.mxu0 0
  %139 = vmatprep.subr.bf16.mxu0 0
  %140 = vmatpush1.bf16.msra.mxu0 0
  %141 = vmatprep.subr.bf16.mxu0 0
  %142 = vmatpush1.bf16.msra.mxu0 0
  %143 = vmatprep.subr.bf16.mxu0 0
  %144 = vmatpush1.bf16.msra.mxu0 0
  %145 = vmatprep.subr.bf16.mxu0 0
  %146 = vmatpush1.bf16.msra.mxu0 0
  %147 = vmatprep.subr.bf16.mxu0 0
  %148 = vmatpush1.bf16.msra.mxu0 0
  %149 = vmatprep.subr.bf16.mxu0 0
  %150 = vmatpush1.bf16.msra.mxu0 0
  %151 = vmatprep.mubr.bf16.mxu0 0
  %152 = vmatmul.mubr.bf16.gmra.mrb[0].mxu0 %v117
  %v153 = vpop.f32.mrb[0].mxu0
  %v154 = vadd.f32 %v103, %v153
  %v155 = vpop.f32.mrb[0].mxu0
  %v156 = vpop.f32.mrb[0].mxu0
  %v157 = vadd.f32 %v103, %v156
  %v158 = vpop.f32.mrb[0].mxu0
  %159 = vdwg.mxu0
  %v160 = vmax.f32 %v154, 0.0
  %v161 = vmax.f32 %v157, 0.0
  %v162 = vpack.c.bf16 %v161, %v160
  %v163 = vld [vmem:[%s3] sm:$0xf]
  %v164 = vld [vmem:[%s3 + $0x4] sm:$0xf]
  %v165 = vld [vmem:[%s3 + $0x8] sm:$0xf]
  %v166 = vld [vmem:[%s3 + $0xc] sm:$0xf]
  %v167 = vld [vmem:[%s3 + $0x10] sm:$0xf]
  %v168 = vld [vmem:[%s3 + $0x14] sm:$0xf]
  %v169 = vld [vmem:[%s3 + $0x18] sm:$0xf]
  %v170 = vld [vmem:[%s3 + $0x1c] sm:$0xf]
  %v171 = vlaneseq
  %v172 = vshrl.u32 %v171, 7
  %v173 = vsub.s32 2, %v172
  %v174 = vrot.slane %v24, %v173
  %v183 = vunpack.c.l.b16 %v163
  %v184 = vunpack.c.l.b16 %v164
  %v185 = vunpack.c.l.b16 %v165
  %v186 = vunpack.c.l.b16 %v166
  %v187 = vunpack.c.l.b16 %v167
  %v188 = vunpack.c.l.b16 %v168
  %v189 = vunpack.c.l.b16 %v169
  %v190 = vunpack.c.l.b16 %v170
  %v191 = vpack.c.b16 %v184, %v183
  %v192 = vpack.c.b16 %v186, %v185
  %v193 = vpack.c.b16 %v188, %v187
  %v194 = vpack.c.b16 %v190, %v189
  %vm199 = vcmask 523264
  %v201 = vsel %vm199, %v162, 0
  %203 = vmatprep.subr.bf16.mxu0 0
  %204 = vmatpush1.bf16.msra.mxu0 %v191
  %205 = vmatprep.subr.bf16.mxu0 0
  %206 = vmatpush1.bf16.msra.mxu0 %v192
  %207 = vmatprep.subr.bf16.mxu0 0
  %208 = vmatpush1.bf16.msra.mxu0 %v193
  %209 = vmatprep.subr.bf16.mxu0 0
  %210 = vmatpush1.bf16.msra.mxu0 %v194
  %211 = vmatprep.subr.bf16.mxu0 0
  %212 = vmatpush1.bf16.msra.mxu0 0
  %213 = vmatprep.subr.bf16.mxu0 0
  %214 = vmatpush1.bf16.msra.mxu0 0
  %215 = vmatprep.subr.bf16.mxu0 0
  %216 = vmatpush1.bf16.msra.mxu0 0
  %217 = vmatprep.subr.bf16.mxu0 0
  %218 = vmatpush1.bf16.msra.mxu0 0
  %219 = vmatprep.subr.bf16.mxu0 0
  %220 = vmatpush1.bf16.msra.mxu0 0
  %221 = vmatprep.subr.bf16.mxu0 0
  %222 = vmatpush1.bf16.msra.mxu0 0
  %223 = vmatprep.subr.bf16.mxu0 0
  %224 = vmatpush1.bf16.msra.mxu0 0
  %225 = vmatprep.subr.bf16.mxu0 0
  %226 = vmatpush1.bf16.msra.mxu0 0
  %227 = vmatprep.subr.bf16.mxu0 0
  %228 = vmatpush1.bf16.msra.mxu0 0
  %229 = vmatprep.subr.bf16.mxu0 0
  %230 = vmatpush1.bf16.msra.mxu0 0
  %231 = vmatprep.subr.bf16.mxu0 0
  %232 = vmatpush1.bf16.msra.mxu0 0
  %233 = vmatprep.subr.bf16.mxu0 0
  %234 = vmatpush1.bf16.msra.mxu0 0
  %235 = vmatprep.mubr.bf16.mxu0 0
  %236 = vmatmul.mubr.bf16.gmra.mrb[0].mxu0 %v201
  %v237 = vpop.f32.mrb[0].mxu0
  %v238 = vadd.f32 %v174, %v237
  %v239 = vpop.f32.mrb[0].mxu0
  %v240 = vpop.f32.mrb[0].mxu0
  %v241 = vadd.f32 %v174, %v240
  %v242 = vpop.f32.mrb[0].mxu0
  %243 = vdwg.mxu0
  %v244 = vmax.f32 %v238, 0.0
  %v245 = vmax.f32 %v241, 0.0
  %v246 = vld [vmem:[%s4] sm:$0x1]
  %v248 = vlaneseq
  %v249 = vshrl.u32 %v248, 7
  %v250 = vsub.s32 0, %v249
  %v251 = vrot.slane %v246, %v250
  %v253 = vmul.f32 %v244, %v251
  %v254 = vmul.f32 %v245, %v251
  %v255 = vsel %vm48, %v253, 0.0
  %256 = vadd.xlane.f32.xlu0 %v255
  %v257 = vpop.xlane.xlu0 %256
  %v258 = vsel %vm48, %v254, 0.0
  %259 = vadd.xlane.f32.xlu0 %v258
  %v260 = vpop.xlane.xlu0 %259
  %v261 = vlaneseq
  %v262 = vshrl.u32 %v261, 7
  %v263 = vsub.s32 3, %v262
  %v264 = vrot.slane %v24, %v263
  %v265 = vadd.f32 %v257, %v264
  %v266 = vadd.f32 %v260, %v264
  %vm267 = vcmask 7168
  %268 = vst.msk [vmem:[%s6] sm:$0xff] %vm267, %v265
  %269 = vst.msk [vmem:[%s6 + $0x8] sm:$0xff] %vm267, %v266
  // Predicated region
  $region26: #{tpu_custom_call.1} parent=0 // pred_check
    _
  $region27: #{tpu_custom_call.1} parent=0 // pred_check_branch
    %271 = sbr.rel (0) target = $region29
  $region28: #{tpu_custom_call.1} parent=0 // pred_region
    _
  $region29: #{tpu_custom_call.1} parent=0 // pred_fallthru
    _
  // Predicated region
  $region30: #{tpu_custom_call.1} parent=0 // pred_check
    _
  $region31: #{tpu_custom_call.1} parent=0 // pred_check_branch
    %273 = sbr.rel (0) target = $region33
  $region32: #{tpu_custom_call.1} parent=0 // pred_region
    _
  $region33: #{tpu_custom_call.1} parent=0 // pred_fallthru
    _

</llo_original>
